<compile_context>
chip_gen: v7x
topology: tpu7x:2x2x1
jax: 0.10.0
libtpu: 0.0.40
codegen_flags: <defaults>
</compile_context>

<pallas_src>
import jax
import jax.numpy as jnp
from jax import lax
from jax.experimental import pallas as pl
from jax.experimental.pallas import tpu as pltpu


NEG_BIG = -1e30  # finite large-negative mask value (avoids -inf - -inf NaNs)


def _round_up(x, m):
    return (x + m - 1) // m * m


# ---------------------------------------------------------------------------
# Kernel 1: fused Q/K/V projection, one GEMM per seq tile, weights resident.
# ---------------------------------------------------------------------------
def _qkv_proj_kernel(x_ref, w_ref, qkv_ref):
    qkv_ref[...] = jnp.dot(
        x_ref[...], w_ref[...], preferred_element_type=jnp.float32
    ).astype(qkv_ref.dtype)


# ---------------------------------------------------------------------------
# Kernel 2: causal flash attention over a flat lower-triangular (qi, ki) grid.
# qi_ref / ki_ref are scalar-prefetched SMEM arrays mapping grid step -> block.
# ---------------------------------------------------------------------------
def _flash_attn_kernel(qi_ref, ki_ref, q_ref, k_ref, v_ref, o_ref,
                       m_sc, l_sc, acc_sc):
    t = pl.program_id(0)
    qi = qi_ref[t]
    ki = ki_ref[t]

    @pl.when(ki == 0)
    def _init():
        m_sc[...] = jnp.full_like(m_sc, NEG_BIG)
        l_sc[...] = jnp.zeros_like(l_sc)
        acc_sc[...] = jnp.zeros_like(acc_sc)

    # scores: contract last dims directly on the MXU (no k.T relayout);
    # bf16 inputs, f32 accumulation.
    s = lax.dot_general(q_ref[...], k_ref[...], (((1,), (1,)), ((), ())),
                        preferred_element_type=jnp.float32)

    # Causal mask only on the diagonal block; with tile_q == tile_kv it
    # reduces to the local `col > row` condition (no global offsets).
    def _apply_causal_mask(scores):
        row = lax.broadcasted_iota(jnp.int32, scores.shape, 0)
        col = lax.broadcasted_iota(jnp.int32, scores.shape, 1)
        return jnp.where(col > row, NEG_BIG, scores)

    s = lax.cond(ki == qi, _apply_causal_mask, lambda scores: scores, s)

    # online softmax update
    m_prev = m_sc[...]
    m_new = jnp.maximum(m_prev, jnp.max(s, axis=-1, keepdims=True))
    alpha = jnp.exp(m_prev - m_new)
    p = jnp.exp(s - m_new)
    l_sc[...] = alpha * l_sc[...] + jnp.sum(p, axis=-1, keepdims=True)
    acc_sc[...] = alpha * acc_sc[...] + jnp.dot(
        p.astype(v_ref.dtype), v_ref[...], preferred_element_type=jnp.float32)
    m_sc[...] = m_new

    # ki == qi is the last kv block for this query row (triangular schedule).
    @pl.when(ki == qi)
    def _finalize():
        inv_l = pl.reciprocal(l_sc[...], approx=True)  # EUP slot, ~free
        o_ref[...] = (acc_sc[...] * inv_l).astype(o_ref.dtype)


# ---------------------------------------------------------------------------
# Wrapper
# ---------------------------------------------------------------------------
def masked_attention_v2(x, wq, wk, wv, *, tile_q=256, tile_kv=256, proj_tile=512):
    """Causal (masked) self-attention matching MaskedAttentionV2.forward.

    x: (seq, d_in); wq/wk/wv: (d_in, d_out) pre-transposed nn.Linear weights
    (no bias). Returns (seq, d_out) float32.
    """
    assert tile_q == tile_kv, "causal diagonal mask assumes tile_q == tile_kv"
    seq, d_in = x.shape
    d_out = wq.shape[1]

    bf16, f32 = jnp.bfloat16, jnp.float32

    # Lane-dense padding: feature dims to multiples of 128, seq to tile size.
    d_in_p = _round_up(d_in, 128)
    d_p = _round_up(d_out, 128)
    s_p = _round_up(seq, tile_q)
    if s_p % proj_tile != 0:
        proj_tile = tile_q  # fall back so the projection grid divides evenly

    # Fold the 1/sqrt(d_out) softmax scale into W_query; concat Wq|Wk|Wv into
    # one fused (d_in_p, 3*d_p) bf16 weight (single MXU weight push, wide N).
    scale = 1.0 / (d_out ** 0.5)
    w_qkv = jnp.zeros((d_in_p, 3 * d_p), f32)
    w_qkv = w_qkv.at[:d_in, 0 * d_p:0 * d_p + d_out].set(wq.astype(f32) * scale)
    w_qkv = w_qkv.at[:d_in, 1 * d_p:1 * d_p + d_out].set(wk.astype(f32))
    w_qkv = w_qkv.at[:d_in, 2 * d_p:2 * d_p + d_out].set(wv.astype(f32))
    w_qkv = w_qkv.astype(bf16)

    x_p = jnp.zeros((s_p, d_in_p), f32).at[:seq, :d_in].set(x.astype(f32))
    x_p = x_p.astype(bf16)

    # --- fused Q/K/V projection ---
    n_proj = s_p // proj_tile
    qkv = pl.pallas_call(
        _qkv_proj_kernel,
        out_shape=jax.ShapeDtypeStruct((s_p, 3 * d_p), bf16),
        grid=(n_proj,),
        in_specs=[
            pl.BlockSpec((proj_tile, d_in_p), lambda i: (i, 0)),
            pl.BlockSpec((d_in_p, 3 * d_p), lambda i: (0, 0)),   # resident
        ],
        out_specs=pl.BlockSpec((proj_tile, 3 * d_p), lambda i: (i, 0)),
        compiler_params=pltpu.CompilerParams(dimension_semantics=("parallel",)),
    )(x_p, w_qkv)

    # --- causal flash attention over a flat lower-triangular grid ---
    n_q = s_p // tile_q
    qi_list, ki_list = [], []
    for q_blk in range(n_q):
        for k_blk in range(q_blk + 1):
            qi_list.append(q_blk)
            ki_list.append(k_blk)
    qi_arr = jnp.asarray(qi_list, dtype=jnp.int32)
    ki_arr = jnp.asarray(ki_list, dtype=jnp.int32)
    n_steps = len(qi_list)  # n_q * (n_q + 1) // 2

    grid_spec = pltpu.PrefetchScalarGridSpec(
        num_scalar_prefetch=2,
        grid=(n_steps,),
        in_specs=[
            # Q, K, V are column-blocks 0 / 1 / 2 of the fused projection slab.
            pl.BlockSpec((tile_q, d_p), lambda t, qi, ki: (qi[t], 0)),
            pl.BlockSpec((tile_kv, d_p), lambda t, qi, ki: (ki[t], 1)),
            pl.BlockSpec((tile_kv, d_p), lambda t, qi, ki: (ki[t], 2)),
        ],
        out_specs=pl.BlockSpec((tile_q, d_p), lambda t, qi, ki: (qi[t], 0)),
        scratch_shapes=[
            pltpu.VMEM((tile_q, 1), jnp.float32),    # m (running max)
            pltpu.VMEM((tile_q, 1), jnp.float32),    # l (running denom)
            pltpu.VMEM((tile_q, d_p), jnp.float32),  # acc
        ],
    )
    out_p = pl.pallas_call(
        _flash_attn_kernel,
        out_shape=jax.ShapeDtypeStruct((s_p, d_p), f32),
        grid_spec=grid_spec,
        compiler_params=pltpu.CompilerParams(dimension_semantics=("arbitrary",)),
    )(qi_arr, ki_arr, qkv, qkv, qkv)

    return out_p[:seq, :d_out]


# ---------------------------------------------------------------------------
# Pure-JAX f32 reference (mirrors the PyTorch module)
# ---------------------------------------------------------------------------
def reference(x, wq, wk, wv):
    q = x @ wq
    k = x @ wk
    v = x @ wv
    s = q @ k.T
    seq = s.shape[0]
    mask = jnp.triu(jnp.ones((seq, seq), dtype=bool), k=1)
    s = jnp.where(mask, -jnp.inf, s)
    w = jax.nn.softmax(s / (k.shape[-1] ** 0.5), axis=-1)
    return w @ v


if __name__ == "__main__":
    key = jax.random.PRNGKey(0)

    def make_inputs(key, seq, d_in, d_out):
        kx, kq, kk, kv = jax.random.split(key, 4)
        x = jax.random.normal(kx, (seq, d_in), dtype=jnp.float32)
        bound = 1.0 / (d_in ** 0.5)  # deterministic nn.Linear-style init
        wq = jax.random.uniform(kq, (d_in, d_out), jnp.float32, -bound, bound)
        wk = jax.random.uniform(kk, (d_in, d_out), jnp.float32, -bound, bound)
        wv = jax.random.uniform(kv, (d_in, d_out), jnp.float32, -bound, bound)
        return x, wq, wk, wv

    # Tolerance covers bf16 MXU inputs (f32 accumulation) + EUP approx recip.
    TOL = dict(atol=3e-2, rtol=3e-2)

    # 1) the module's nominal small shape (single-block path)
    x, wq, wk, wv = make_inputs(key, seq=8, d_in=32, d_out=16)
    out = jax.block_until_ready(masked_attention_v2(x, wq, wk, wv))
    ref = reference(x, wq, wk, wv)
    assert out.shape == ref.shape
    assert jnp.allclose(out, ref, **TOL), "mismatch vs reference (seq=8)"

    # 2) a multi-block shape exercising the triangular grid + online softmax
    x2, wq2, wk2, wv2 = make_inputs(jax.random.PRNGKey(1), seq=384, d_in=64, d_out=32)
    out2 = jax.block_until_ready(masked_attention_v2(x2, wq2, wk2, wv2))
    ref2 = reference(x2, wq2, wk2, wv2)
    assert out2.shape == ref2.shape
    assert jnp.allclose(out2, ref2, **TOL), "mismatch vs reference (seq=384)"

    print("KERNEL_OK")
</pallas_src>

<mosaic_0001>
module attributes {stable_mosaic.version = 11 : i64} {
  func.func @_qkv_proj_kernel(%arg0: i32, %arg1: memref<256x128xbf16, #tpu.memory_space<vmem>>, %arg2: memref<128x384xbf16, #tpu.memory_space<vmem>>, %arg3: memref<256x384xbf16, #tpu.memory_space<vmem>>) attributes {dimension_semantics = [#tpu.dimension_semantics<parallel>], iteration_bounds = array<i64: 1>, scalar_prefetch = 0 : i64, scratch_operands = 0 : i64, tpu.core_type = #tpu.core_type<tc>, window_params = [{transform_indices = @transform_0, window_bounds = array<i64: 256, 128>}, {pipeline_mode = #tpu.pipeline_mode<synchronous>, transform_indices = @transform_1, window_bounds = array<i64: 128, 384>}, {transform_indices = @transform_2, window_bounds = array<i64: 256, 384>}]} {
    %c0 = arith.constant 0 : index
    %c0_0 = arith.constant 0 : index
    %0 = vector.load %arg1[%c0, %c0_0] : memref<256x128xbf16, #tpu.memory_space<vmem>>, vector<256x128xbf16>
    %c0_1 = arith.constant 0 : index
    %c0_2 = arith.constant 0 : index
    %1 = vector.load %arg2[%c0_1, %c0_2] : memref<128x384xbf16, #tpu.memory_space<vmem>>, vector<128x384xbf16>
    %cst = arith.constant dense<0.000000e+00> : vector<256x384xf32>
    %2 = tpu.matmul %0, %1, %cst {dimension_numbers = #tpu.dot_dimension_numbers<[1], [0], [0], [1], [0, 0, 1, 1], [], []>} : vector<256x128xbf16>, vector<128x384xbf16>, vector<256x384xf32> -> vector<256x384xf32>
    %3 = arith.truncf %2 : vector<256x384xf32> to vector<256x384xbf16>
    %c0_3 = arith.constant 0 : index
    %c0_4 = arith.constant 0 : index
    %4 = vector.load %arg3[%c0_3, %c0_4] : memref<256x384xbf16, #tpu.memory_space<vmem>>, vector<256x384xbf16>
    tpu.vector_store %arg3[%c0_3, %c0_4], %3 {strides = array<i32>} : memref<256x384xbf16, #tpu.memory_space<vmem>>, vector<256x384xbf16>,
    return
  }
  func.func @transform_0(%arg0: i32) -> (i32, i32) {
    %c0_i32 = arith.constant 0 : i32
    %c0_i32_0 = arith.constant 0 : i32
    return %arg0, %c0_i32 : i32, i32
  }
  func.func @transform_1(%arg0: i32) -> (i32, i32) {
    %c0_i32 = arith.constant 0 : i32
    %c0_i32_0 = arith.constant 0 : i32
    %c0_i32_1 = arith.constant 0 : i32
    return %c0_i32, %c0_i32_0 : i32, i32
  }
  func.func @transform_2(%arg0: i32) -> (i32, i32) {
    %c0_i32 = arith.constant 0 : i32
    %c0_i32_0 = arith.constant 0 : i32
    return %arg0, %c0_i32 : i32, i32
  }
}

</mosaic_0001>

<llo_original>
// kernel: tpu_custom_call.1
$region0: #{tpu_custom_call.1}
  #allocation0 [shape = 'u32[]', space=smem, size = 0x4, offset = 0x4, fixed_abs, tag = 'smem constant byte address 0x4 - core index']
  #allocation1 [shape = 'u32[144,128]{1,0:T(1,128)}', space=vmem, size = 0x12000, scoped, tag = 'internal scratch']
  %s0 = inlined_call_operand.hbm [shape: bf16[256,128], index: 0, kind: input, shape index: {}]
  %s1 = inlined_call_operand.hbm [shape: bf16[128,384], index: 1, kind: input, shape index: {}]
  %s2 = inlined_call_operand.hbm [shape: bf16[256,384], index: 2, kind: output, shape index: {}]
  %s3 = sld [smem:[#allocation0]]
  $region26: #{tpu_custom_call.1} parent=0
    _
  %s5 = ssub.s32 1, %s3
  %s6 = scalar_select 0, %s5, %s3
  $region1: #{tpu_custom_call.1} parent=0
    #allocation2 [shape = 'u8[65536]{0}', space=vmem, size = 0x10000, scoped, tag = 'input window, operand 0, single buffered']
    #allocation3 [shape = 's32[1]{0}', space=sflag, size = 0x4, scoped, tag = 'scoped memory for tpu_custom_call.1']
    #allocation4 [shape = 's32[1]{0}', space=sflag, size = 0x4, scoped, tag = 'scoped memory for tpu_custom_call.1']
    #allocation5 [shape = 'u8[98304]{0}', space=vmem, size = 0x18000, scoped, tag = 'input window, operand 1, single buffered']
    #allocation6 [shape = 's32[1]{0}', space=sflag, size = 0x4, scoped, tag = 'scoped memory for tpu_custom_call.1']
    #allocation7 [shape = 'u8[196608]{0}', space=vmem, size = 0x30000, scoped, tag = 'output window, operand 0, single buffered']
    %7 = vsyncpa [#allocation3], 0
    %8 = vsyncpa [#allocation6], 0
    %9 = vsyncpa [#allocation4], 0
    // Predicated region
    $region2: #{tpu_custom_call.1} parent=1 // pred_check
      _
    $region3: #{tpu_custom_call.1} parent=1 // pred_check_branch
      %11 = sbr.rel (0) target = $region5
    $region4: #{tpu_custom_call.1} parent=1 // pred_region
      %s13 = ssub.s32 2048, 2048
      %14 = vsyncadd [#allocation3], %s13
      %s15 = sshll.u32 [#allocation2], 4
      %s16 = int_to_ptr.vmem [resolvable:$true] %s15
      %21 = dma.hbm_to_vmem [thread:$0]  %s0, 2048, %s16, [#allocation3], 64, 64, 4
    $region5: #{tpu_custom_call.1} parent=1 // pred_fallthru
      _
    // Predicated region
    $region6: #{tpu_custom_call.1} parent=1 // pred_check
      _
    $region7: #{tpu_custom_call.1} parent=1 // pred_check_branch
      %23 = sbr.rel (0) target = $region9
    $region8: #{tpu_custom_call.1} parent=1 // pred_region
      %s25 = ssub.s32 3072, 3072
      %26 = vsyncadd [#allocation6], %s25
      %s27 = sshll.u32 [#allocation5], 4
      %s28 = int_to_ptr.vmem [resolvable:$true] %s27
      %33 = dma.hbm_to_vmem [thread:$0]  %s1, 3072, %s28, [#allocation6], 192, 192, 12
    $region9: #{tpu_custom_call.1} parent=1 // pred_fallthru
      _
    // Predicated region
    $region10: #{tpu_custom_call.1} parent=1 // pred_check
      _
    $region11: #{tpu_custom_call.1} parent=1 // pred_check_branch
      %35 = sbr.rel (0) target = $region13
    $region12: #{tpu_custom_call.1} parent=1 // pred_region
      %36 = dma.done [#allocation3], 2048
    $region13: #{tpu_custom_call.1} parent=1 // pred_fallthru
      _
    // Predicated region
    $region14: #{tpu_custom_call.1} parent=1 // pred_check
      _
    $region15: #{tpu_custom_call.1} parent=1 // pred_check_branch
      %38 = sbr.rel (0) target = $region17
    $region16: #{tpu_custom_call.1} parent=1 // pred_region
      %39 = dma.done [#allocation6], 3072
    $region17: #{tpu_custom_call.1} parent=1 // pred_fallthru
      _
    %v41 = vld [vmem:[#allocation2] sm:$0xf]
    %v42 = vld [vmem:[#allocation2 + $0x4] sm:$0xf]
    %v43 = vld [vmem:[#allocation2 + $0x8] sm:$0xf]
    %v44 = vld [vmem:[#allocation2 + $0xc] sm:$0xf]
    %v45 = vld [vmem:[#allocation2 + $0x10] sm:$0xf]
    %v46 = vld [vmem:[#allocation2 + $0x14] sm:$0xf]
    %v47 = vld [vmem:[#allocation2 + $0x18] sm:$0xf]
    %v48 = vld [vmem:[#allocation2 + $0x1c] sm:$0xf]
    %v49 = vld [vmem:[#allocation2 + $0x20] sm:$0xf]
    %v50 = vld [vmem:[#allocation2 + $0x24] sm:$0xf]
    %v51 = vld [vmem:[#allocation2 + $0x28] sm:$0xf]
    %v52 = vld [vmem:[#allocation2 + $0x2c] sm:$0xf]
    %v53 = vld [vmem:[#allocation2 + $0x30] sm:$0xf]
    %v54 = vld [vmem:[#allocation2 + $0x34] sm:$0xf]
    %v55 = vld [vmem:[#allocation2 + $0x38] sm:$0xf]
    %v56 = vld [vmem:[#allocation2 + $0x3c] sm:$0xf]
    %v57 = vld [vmem:[#allocation2 + $0x40] sm:$0xf]
    %v58 = vld [vmem:[#allocation2 + $0x44] sm:$0xf]
    %v59 = vld [vmem:[#allocation2 + $0x48] sm:$0xf]
    %v60 = vld [vmem:[#allocation2 + $0x4c] sm:$0xf]
    %v61 = vld [vmem:[#allocation2 + $0x50] sm:$0xf]
    %v62 = vld [vmem:[#allocation2 + $0x54] sm:$0xf]
    %v63 = vld [vmem:[#allocation2 + $0x58] sm:$0xf]
    %v64 = vld [vmem:[#allocation2 + $0x5c] sm:$0xf]
    %v65 = vld [vmem:[#allocation2 + $0x60] sm:$0xf]
    %v66 = vld [vmem:[#allocation2 + $0x64] sm:$0xf]
    %v67 = vld [vmem:[#allocation2 + $0x68] sm:$0xf]
    %v68 = vld [vmem:[#allocation2 + $0x6c] sm:$0xf]
    %v69 = vld [vmem:[#allocation2 + $0x70] sm:$0xf]
    %v70 = vld [vmem:[#allocation2 + $0x74] sm:$0xf]
    %v71 = vld [vmem:[#allocation2 + $0x78] sm:$0xf]
    %v72 = vld [vmem:[#allocation2 + $0x7c] sm:$0xf]
    %v73 = vld [vmem:[#allocation5] sm:$0xff]
    %v74 = vld [vmem:[#allocation5 + $0x8] sm:$0xf]
    %v75 = vld [vmem:[#allocation5 + $0xc] sm:$0xff]
    %v76 = vld [vmem:[#allocation5 + $0x14] sm:$0xf]
    %v77 = vld [vmem:[#allocation5 + $0x18] sm:$0xff]
    %v78 = vld [vmem:[#allocation5 + $0x20] sm:$0xf]
    %v79 = vld [vmem:[#allocation5 + $0x24] sm:$0xff]
    %v80 = vld [vmem:[#allocation5 + $0x2c] sm:$0xf]
    %v81 = vld [vmem:[#allocation5 + $0x30] sm:$0xff]
    %v82 = vld [vmem:[#allocation5 + $0x38] sm:$0xf]
    %v83 = vld [vmem:[#allocation5 + $0x3c] sm:$0xff]
    %v84 = vld [vmem:[#allocation5 + $0x44] sm:$0xf]
    %v85 = vld [vmem:[#allocation5 + $0x48] sm:$0xff]
    %v86 = vld [vmem:[#allocation5 + $0x50] sm:$0xf]
    %v87 = vld [vmem:[#allocation5 + $0x54] sm:$0xff]
    %v88 = vld [vmem:[#allocation5 + $0x5c] sm:$0xf]
    %v89 = vld [vmem:[#allocation5 + $0x60] sm:$0xff]
    %v90 = vld [vmem:[#allocation5 + $0x68] sm:$0xf]
    %v91 = vld [vmem:[#allocation5 + $0x6c] sm:$0xff]
    %v92 = vld [vmem:[#allocation5 + $0x74] sm:$0xf]
    %v93 = vld [vmem:[#allocation5 + $0x78] sm:$0xff]
    %v94 = vld [vmem:[#allocation5 + $0x80] sm:$0xf]
    %v95 = vld [vmem:[#allocation5 + $0x84] sm:$0xff]
    %v96 = vld [vmem:[#allocation5 + $0x8c] sm:$0xf]
    %v97 = vld [vmem:[#allocation5 + $0x90] sm:$0xff]
    %v98 = vld [vmem:[#allocation5 + $0x98] sm:$0xf]
    %v99 = vld [vmem:[#allocation5 + $0x9c] sm:$0xff]
    %v100 = vld [vmem:[#allocation5 + $0xa4] sm:$0xf]
    %v101 = vld [vmem:[#allocation5 + $0xa8] sm:$0xff]
    %v102 = vld [vmem:[#allocation5 + $0xb0] sm:$0xf]
    %v103 = vld [vmem:[#allocation5 + $0xb4] sm:$0xff]
    %v104 = vld [vmem:[#allocation5 + $0xbc] sm:$0xf]
    %v137 = vunpack.c.l.b16 %v41
    %v138 = vunpack.c.l.b16 %v42
    %v139 = vunpack.c.l.b16 %v43
    %v140 = vunpack.c.l.b16 %v44
    %v141 = vunpack.c.l.b16 %v45
    %v142 = vunpack.c.l.b16 %v46
    %v143 = vunpack.c.l.b16 %v47
    %v144 = vunpack.c.l.b16 %v48
    %v145 = vunpack.c.l.b16 %v49
    %v146 = vunpack.c.l.b16 %v50
    %v147 = vunpack.c.l.b16 %v51
    %v148 = vunpack.c.l.b16 %v52
    %v149 = vunpack.c.l.b16 %v53
    %v150 = vunpack.c.l.b16 %v54
    %v151 = vunpack.c.l.b16 %v55
    %v152 = vunpack.c.l.b16 %v56
    %v153 = vunpack.c.l.b16 %v57
    %v154 = vunpack.c.l.b16 %v58
    %v155 = vunpack.c.l.b16 %v59
    %v156 = vunpack.c.l.b16 %v60
    %v157 = vunpack.c.l.b16 %v61
    %v158 = vunpack.c.l.b16 %v62
    %v159 = vunpack.c.l.b16 %v63
    %v160 = vunpack.c.l.b16 %v64
    %v161 = vunpack.c.l.b16 %v65
    %v162 = vunpack.c.l.b16 %v66
    %v163 = vunpack.c.l.b16 %v67
    %v164 = vunpack.c.l.b16 %v68
    %v165 = vunpack.c.l.b16 %v69
    %v166 = vunpack.c.l.b16 %v70
    %v167 = vunpack.c.l.b16 %v71
    %v168 = vunpack.c.l.b16 %v72
    %v169 = vpack.c.b16 %v138, %v137
    %v170 = vpack.c.b16 %v140, %v139
    %v171 = vpack.c.b16 %v142, %v141
    %v172 = vpack.c.b16 %v144, %v143
    %v173 = vpack.c.b16 %v146, %v145
    %v174 = vpack.c.b16 %v148, %v147
    %v175 = vpack.c.b16 %v150, %v149
    %v176 = vpack.c.b16 %v152, %v151
    %v177 = vpack.c.b16 %v154, %v153
    %v178 = vpack.c.b16 %v156, %v155
    %v179 = vpack.c.b16 %v158, %v157
    %v180 = vpack.c.b16 %v160, %v159
    %v181 = vpack.c.b16 %v162, %v161
    %v182 = vpack.c.b16 %v164, %v163
    %v183 = vpack.c.b16 %v166, %v165
    %v184 = vpack.c.b16 %v168, %v167
    %v233 = vunpack.c.l.b16 %v73
    %v234 = vunpack.c.h.b16 %v73
    %v235 = vunpack.c.l.b16 %v74
    %v236 = vunpack.c.l.b16 %v75
    %v237 = vunpack.c.h.b16 %v75
    %v238 = vunpack.c.l.b16 %v76
    %v239 = vunpack.c.l.b16 %v77
    %v240 = vunpack.c.h.b16 %v77
    %v241 = vunpack.c.l.b16 %v78
    %v242 = vunpack.c.l.b16 %v79
    %v243 = vunpack.c.h.b16 %v79
    %v244 = vunpack.c.l.b16 %v80
    %v245 = vunpack.c.l.b16 %v81
    %v246 = vunpack.c.h.b16 %v81
    %v247 = vunpack.c.l.b16 %v82
    %v248 = vunpack.c.l.b16 %v83
    %v249 = vunpack.c.h.b16 %v83
    %v250 = vunpack.c.l.b16 %v84
    %v251 = vunpack.c.l.b16 %v85
    %v252 = vunpack.c.h.b16 %v85
    %v253 = vunpack.c.l.b16 %v86
    %v254 = vunpack.c.l.b16 %v87
    %v255 = vunpack.c.h.b16 %v87
    %v256 = vunpack.c.l.b16 %v88
    %v257 = vunpack.c.l.b16 %v89
    %v258 = vunpack.c.h.b16 %v89
    %v259 = vunpack.c.l.b16 %v90
    %v260 = vunpack.c.l.b16 %v91
    %v261 = vunpack.c.h.b16 %v91
    %v262 = vunpack.c.l.b16 %v92
    %v263 = vunpack.c.l.b16 %v93
    %v264 = vunpack.c.h.b16 %v93
    %v265 = vunpack.c.l.b16 %v94
    %v266 = vunpack.c.l.b16 %v95
    %v267 = vunpack.c.h.b16 %v95
    %v268 = vunpack.c.l.b16 %v96
    %v269 = vunpack.c.l.b16 %v97
    %v270 = vunpack.c.h.b16 %v97
    %v271 = vunpack.c.l.b16 %v98
    %v272 = vunpack.c.l.b16 %v99
    %v273 = vunpack.c.h.b16 %v99
    %v274 = vunpack.c.l.b16 %v100
    %v275 = vunpack.c.l.b16 %v101
    %v276 = vunpack.c.h.b16 %v101
    %v277 = vunpack.c.l.b16 %v102
    %v278 = vunpack.c.l.b16 %v103
    %v279 = vunpack.c.h.b16 %v103
    %v280 = vunpack.c.l.b16 %v104
    %v281 = vpack.c.b16 %v236, %v233
    %v282 = vpack.c.b16 %v237, %v234
    %v283 = vpack.c.b16 %v238, %v235
    %v284 = vpack.c.b16 %v242, %v239
    %v285 = vpack.c.b16 %v243, %v240
    %v286 = vpack.c.b16 %v244, %v241
    %v287 = vpack.c.b16 %v248, %v245
    %v288 = vpack.c.b16 %v249, %v246
    %v289 = vpack.c.b16 %v250, %v247
    %v290 = vpack.c.b16 %v254, %v251
    %v291 = vpack.c.b16 %v255, %v252
    %v292 = vpack.c.b16 %v256, %v253
    %v293 = vpack.c.b16 %v260, %v257
    %v294 = vpack.c.b16 %v261, %v258
    %v295 = vpack.c.b16 %v262, %v259
    %v296 = vpack.c.b16 %v266, %v263
    %v297 = vpack.c.b16 %v267, %v264
    %v298 = vpack.c.b16 %v268, %v265
    %v299 = vpack.c.b16 %v272, %v269
    %v300 = vpack.c.b16 %v273, %v270
    %v301 = vpack.c.b16 %v274, %v271
    %v302 = vpack.c.b16 %v278, %v275
    %v303 = vpack.c.b16 %v279, %v276
    %v304 = vpack.c.b16 %v280, %v277
    %329 = vmatprep.subr.bf16.mxu0 %v282
    %330 = vmatpush1.bf16.msra.mxu0 %v281
    %331 = vmatprep.subr.bf16.mxu0 %v285
    %332 = vmatpush1.bf16.msra.mxu0 %v284
    %333 = vmatprep.subr.bf16.mxu0 %v288
    %334 = vmatpush1.bf16.msra.mxu0 %v287
    %335 = vmatprep.subr.bf16.mxu0 %v291
    %336 = vmatpush1.bf16.msra.mxu0 %v290
    %337 = vmatprep.subr.bf16.mxu0 %v294
    %338 = vmatpush1.bf16.msra.mxu0 %v293
    %339 = vmatprep.subr.bf16.mxu0 %v297
    %340 = vmatpush1.bf16.msra.mxu0 %v296
    %341 = vmatprep.subr.bf16.mxu0 %v300
    %342 = vmatpush1.bf16.msra.mxu0 %v299
    %343 = vmatprep.subr.bf16.mxu0 %v303
    %344 = vmatpush1.bf16.msra.mxu0 %v302
    %345 = vmatprep.subr.bf16.mxu0 0
    %346 = vmatpush1.bf16.msra.mxu0 0
    %347 = vmatprep.subr.bf16.mxu0 0
    %348 = vmatpush1.bf16.msra.mxu0 0
    %349 = vmatprep.subr.bf16.mxu0 0
    %350 = vmatpush1.bf16.msra.mxu0 0
    %351 = vmatprep.subr.bf16.mxu0 0
    %352 = vmatpush1.bf16.msra.mxu0 0
    %353 = vmatprep.subr.bf16.mxu0 0
    %354 = vmatpush1.bf16.msra.mxu0 0
    %355 = vmatprep.subr.bf16.mxu0 0
    %356 = vmatpush1.bf16.msra.mxu0 0
    %357 = vmatprep.subr.bf16.mxu0 0
    %358 = vmatpush1.bf16.msra.mxu0 0
    %359 = vmatprep.subr.bf16.mxu0 0
    %360 = vmatpush1.bf16.msra.mxu0 0
    %361 = vmatprep.mubr.bf16.mxu0 0
    %362 = vmatmul.mubr.bf16.gmra.mrb[0].mxu0 %v169
    %v363 = vpop.f32.mrb[0].mxu0
    %v364 = vadd.f32 0.0, %v363
    %v365 = vpop.f32.mrb[0].mxu0
    %v366 = vadd.f32 0.0, %v365
    %v367 = vpop.f32.mrb[0].mxu0
    %v368 = vadd.f32 0.0, %v367
    %v369 = vpop.f32.mrb[0].mxu0
    %v370 = vadd.f32 0.0, %v369
    %371 = vmatprep.mubr.bf16.mxu0 0
    %372 = vmatmul.mubr.bf16.gmra.mrb[0].mxu0 %v170
    %v373 = vpop.f32.mrb[0].mxu0
    %v374 = vadd.f32 0.0, %v373
    %v375 = vpop.f32.mrb[0].mxu0
    %v376 = vadd.f32 0.0, %v375
    %v377 = vpop.f32.mrb[0].mxu0
    %v378 = vadd.f32 0.0, %v377
    %v379 = vpop.f32.mrb[0].mxu0
    %v380 = vadd.f32 0.0, %v379
    %381 = vmatprep.mubr.bf16.mxu0 0
    %382 = vmatmul.mubr.bf16.gmra.mrb[0].mxu0 %v171
    %v383 = vpop.f32.mrb[0].mxu0
    %v384 = vadd.f32 0.0, %v383
    %v385 = vpop.f32.mrb[0].mxu0
    %v386 = vadd.f32 0.0, %v385
    %v387 = vpop.f32.mrb[0].mxu0
    %v388 = vadd.f32 0.0, %v387
    %v389 = vpop.f32.mrb[0].mxu0
    %v390 = vadd.f32 0.0, %v389
    %391 = vmatprep.mubr.bf16.mxu0 0
    %392 = vmatmul.mubr.bf16.gmra.mrb[0].mxu0 %v172
    %v393 = vpop.f32.mrb[0].mxu0
    %v394 = vadd.f32 0.0, %v393
    %v395 = vpop.f32.mrb[0].mxu0
    %v396 = vadd.f32 0.0, %v395
    %v397 = vpop.f32.mrb[0].mxu0
    %v398 = vadd.f32 0.0, %v397
    %v399 = vpop.f32.mrb[0].mxu0
    %v400 = vadd.f32 0.0, %v399
    %401 = vmatprep.mubr.bf16.mxu0 0
    %402 = vmatmul.mubr.bf16.gmra.mrb[0].mxu0 %v173
    %v403 = vpop.f32.mrb[0].mxu0
    %v404 = vadd.f32 0.0, %v403
    %v405 = vpop.f32.mrb[0].mxu0
    %v406 = vadd.f32 0.0, %v405
    %v407 = vpop.f32.mrb[0].mxu0
    %v408 = vadd.f32 0.0, %v407
    %v409 = vpop.f32.mrb[0].mxu0
    %v410 = vadd.f32 0.0, %v409
    %411 = vmatprep.mubr.bf16.mxu0 0
    %412 = vmatmul.mubr.bf16.gmra.mrb[0].mxu0 %v174
    %v413 = vpop.f32.mrb[0].mxu0
    %v414 = vadd.f32 0.0, %v413
    %v415 = vpop.f32.mrb[0].mxu0
    %v416 = vadd.f32 0.0, %v415
    %v417 = vpop.f32.mrb[0].mxu0
    %v418 = vadd.f32 0.0, %v417
    %v419 = vpop.f32.mrb[0].mxu0
    %v420 = vadd.f32 0.0, %v419
    %421 = vmatprep.mubr.bf16.mxu0 0
    %422 = vmatmul.mubr.bf16.gmra.mrb[0].mxu0 %v175
    %v423 = vpop.f32.mrb[0].mxu0
    %v424 = vadd.f32 0.0, %v423
    %v425 = vpop.f32.mrb[0].mxu0
    %v426 = vadd.f32 0.0, %v425
    %v427 = vpop.f32.mrb[0].mxu0
    %v428 = vadd.f32 0.0, %v427
    %v429 = vpop.f32.mrb[0].mxu0
    %v430 = vadd.f32 0.0, %v429
    %431 = vmatprep.mubr.bf16.mxu0 0
    %432 = vmatmul.mubr.bf16.gmra.mrb[0].mxu0 %v176
    %v433 = vpop.f32.mrb[0].mxu0
    %v434 = vadd.f32 0.0, %v433
    %v435 = vpop.f32.mrb[0].mxu0
    %v436 = vadd.f32 0.0, %v435
    %v437 = vpop.f32.mrb[0].mxu0
    %v438 = vadd.f32 0.0, %v437
    %v439 = vpop.f32.mrb[0].mxu0
    %v440 = vadd.f32 0.0, %v439
    %441 = vmatprep.mubr.bf16.mxu0 0
    %442 = vmatmul.mubr.bf16.gmra.mrb[0].mxu0 %v177
    %v443 = vpop.f32.mrb[0].mxu0
    %v444 = vadd.f32 0.0, %v443
    %v445 = vpop.f32.mrb[0].mxu0
    %v446 = vadd.f32 0.0, %v445
    %v447 = vpop.f32.mrb[0].mxu0
    %v448 = vadd.f32 0.0, %v447
    %v449 = vpop.f32.mrb[0].mxu0
    %v450 = vadd.f32 0.0, %v449
    %451 = vmatprep.mubr.bf16.mxu0 0
    %452 = vmatmul.mubr.bf16.gmra.mrb[0].mxu0 %v178
    %v453 = vpop.f32.mrb[0].mxu0
    %v454 = vadd.f32 0.0, %v453
    %v455 = vpop.f32.mrb[0].mxu0
    %v456 = vadd.f32 0.0, %v455
    %v457 = vpop.f32.mrb[0].mxu0
    %v458 = vadd.f32 0.0, %v457
    %v459 = vpop.f32.mrb[0].mxu0
    %v460 = vadd.f32 0.0, %v459
    %461 = vmatprep.mubr.bf16.mxu0 0
    %462 = vmatmul.mubr.bf16.gmra.mrb[0].mxu0 %v179
    %v463 = vpop.f32.mrb[0].mxu0
    %v464 = vadd.f32 0.0, %v463
    %v465 = vpop.f32.mrb[0].mxu0
    %v466 = vadd.f32 0.0, %v465
    %v467 = vpop.f32.mrb[0].mxu0
    %v468 = vadd.f32 0.0, %v467
    %v469 = vpop.f32.mrb[0].mxu0
    %v470 = vadd.f32 0.0, %v469
    %471 = vmatprep.mubr.bf16.mxu0 0
    %472 = vmatmul.mubr.bf16.gmra.mrb[0].mxu0 %v180
    %v473 = vpop.f32.mrb[0].mxu0
    %v474 = vadd.f32 0.0, %v473
    %v475 = vpop.f32.mrb[0].mxu0
    %v476 = vadd.f32 0.0, %v475
    %v477 = vpop.f32.mrb[0].mxu0
    %v478 = vadd.f32 0.0, %v477
    %v479 = vpop.f32.mrb[0].mxu0
    %v480 = vadd.f32 0.0, %v479
    %481 = vmatprep.mubr.bf16.mxu0 0
    %482 = vmatmul.mubr.bf16.gmra.mrb[0].mxu0 %v181
    %v483 = vpop.f32.mrb[0].mxu0
    %v484 = vadd.f32 0.0, %v483
    %v485 = vpop.f32.mrb[0].mxu0
    %v486 = vadd.f32 0.0, %v485
    %v487 = vpop.f32.mrb[0].mxu0
    %v488 = vadd.f32 0.0, %v487
    %v489 = vpop.f32.mrb[0].mxu0
    %v490 = vadd.f32 0.0, %v489
    %491 = vmatprep.mubr.bf16.mxu0 0
    %492 = vmatmul.mubr.bf16.gmra.mrb[0].mxu0 %v182
    %v493 = vpop.f32.mrb[0].mxu0
    %v494 = vadd.f32 0.0, %v493
    %v495 = vpop.f32.mrb[0].mxu0
    %v496 = vadd.f32 0.0, %v495
    %v497 = vpop.f32.mrb[0].mxu0
    %v498 = vadd.f32 0.0, %v497
    %v499 = vpop.f32.mrb[0].mxu0
    %v500 = vadd.f32 0.0, %v499
    %501 = vmatprep.mubr.bf16.mxu0 0
    %502 = vmatmul.mubr.bf16.gmra.mrb[0].mxu0 %v183
    %v503 = vpop.f32.mrb[0].mxu0
    %v504 = vadd.f32 0.0, %v503
    %v505 = vpop.f32.mrb[0].mxu0
    %v506 = vadd.f32 0.0, %v505
    %v507 = vpop.f32.mrb[0].mxu0
    %v508 = vadd.f32 0.0, %v507
    %v509 = vpop.f32.mrb[0].mxu0
    %v510 = vadd.f32 0.0, %v509
    %511 = vmatprep.mubr.bf16.mxu0 0
    %512 = vmatmul.mubr.bf16.gmra.mrb[0].mxu0 %v184
    %v513 = vpop.f32.mrb[0].mxu0
    %v514 = vadd.f32 0.0, %v513
    %v515 = vpop.f32.mrb[0].mxu0
    %v516 = vadd.f32 0.0, %v515
    %v517 = vpop.f32.mrb[0].mxu0
    %v518 = vadd.f32 0.0, %v517
    %v519 = vpop.f32.mrb[0].mxu0
    %v520 = vadd.f32 0.0, %v519
    %521 = vdwg.mxu0
    %522 = vmatprep.subr.bf16.mxu0 0
    %523 = vmatpush1.bf16.msra.mxu0 %v283
    %524 = vmatprep.subr.bf16.mxu0 0
    %525 = vmatpush1.bf16.msra.mxu0 %v286
    %526 = vmatprep.subr.bf16.mxu0 0
    %527 = vmatpush1.bf16.msra.mxu0 %v289
    %528 = vmatprep.subr.bf16.mxu0 0
    %529 = vmatpush1.bf16.msra.mxu0 %v292
    %530 = vmatprep.subr.bf16.mxu0 0
    %531 = vmatpush1.bf16.msra.mxu0 %v295
    %532 = vmatprep.subr.bf16.mxu0 0
    %533 = vmatpush1.bf16.msra.mxu0 %v298
    %534 = vmatprep.subr.bf16.mxu0 0
    %535 = vmatpush1.bf16.msra.mxu0 %v301
    %536 = vmatprep.subr.bf16.mxu0 0
    %537 = vmatpush1.bf16.msra.mxu0 %v304
    %538 = vmatprep.subr.bf16.mxu0 0
    %539 = vmatpush1.bf16.msra.mxu0 0
    %540 = vmatprep.subr.bf16.mxu0 0
    %541 = vmatpush1.bf16.msra.mxu0 0
    %542 = vmatprep.subr.bf16.mxu0 0
    %543 = vmatpush1.bf16.msra.mxu0 0
    %544 = vmatprep.subr.bf16.mxu0 0
    %545 = vmatpush1.bf16.msra.mxu0 0
    %546 = vmatprep.subr.bf16.mxu0 0
    %547 = vmatpush1.bf16.msra.mxu0 0
    %548 = vmatprep.subr.bf16.mxu0 0
    %549 = vmatpush1.bf16.msra.mxu0 0
    %550 = vmatprep.subr.bf16.mxu0 0
    %551 = vmatpush1.bf16.msra.mxu0 0
    %552 = vmatprep.subr.bf16.mxu0 0
    %553 = vmatpush1.bf16.msra.mxu0 0
    %554 = vmatprep.mubr.bf16.mxu0 0
    %555 = vmatmul.mubr.bf16.gmra.mrb[0].mxu0 %v169
    %v556 = vpop.f32.mrb[0].mxu0
    %v557 = vadd.f32 0.0, %v556
    %v558 = vpop.f32.mrb[0].mxu0
    %v559 = vpop.f32.mrb[0].mxu0
    %v560 = vadd.f32 0.0, %v559
    %v561 = vpop.f32.mrb[0].mxu0
    %562 = vmatprep.mubr.bf16.mxu0 0
    %563 = vmatmul.mubr.bf16.gmra.mrb[0].mxu0 %v170
    %v564 = vpop.f32.mrb[0].mxu0
    %v565 = vadd.f32 0.0, %v564
    %v566 = vpop.f32.mrb[0].mxu0
    %v567 = vpop.f32.mrb[0].mxu0
    %v568 = vadd.f32 0.0, %v567
    %v569 = vpop.f32.mrb[0].mxu0
    %570 = vmatprep.mubr.bf16.mxu0 0
    %571 = vmatmul.mubr.bf16.gmra.mrb[0].mxu0 %v171
    %v572 = vpop.f32.mrb[0].mxu0
    %v573 = vadd.f32 0.0, %v572
    %v574 = vpop.f32.mrb[0].mxu0
    %v575 = vpop.f32.mrb[0].mxu0
    %v576 = vadd.f32 0.0, %v575
    %v577 = vpop.f32.mrb[0].mxu0
    %578 = vmatprep.mubr.bf16.mxu0 0
    %579 = vmatmul.mubr.bf16.gmra.mrb[0].mxu0 %v172
    %v580 = vpop.f32.mrb[0].mxu0
    %v581 = vadd.f32 0.0, %v580
    %v582 = vpop.f32.mrb[0].mxu0
    %v583 = vpop.f32.mrb[0].mxu0
    %v584 = vadd.f32 0.0, %v583
    %v585 = vpop.f32.mrb[0].mxu0
    %586 = vmatprep.mubr.bf16.mxu0 0
    %587 = vmatmul.mubr.bf16.gmra.mrb[0].mxu0 %v173
    %v588 = vpop.f32.mrb[0].mxu0
    %v589 = vadd.f32 0.0, %v588
    %v590 = vpop.f32.mrb[0].mxu0
    %v591 = vpop.f32.mrb[0].mxu0
    %v592 = vadd.f32 0.0, %v591
    %v593 = vpop.f32.mrb[0].mxu0
    %594 = vmatprep.mubr.bf16.mxu0 0
    %595 = vmatmul.mubr.bf16.gmra.mrb[0].mxu0 %v174
    %v596 = vpop.f32.mrb[0].mxu0
    %v597 = vadd.f32 0.0, %v596
    %v598 = vpop.f32.mrb[0].mxu0
    %v599 = vpop.f32.mrb[0].mxu0
    %v600 = vadd.f32 0.0, %v599
    %v601 = vpop.f32.mrb[0].mxu0
    %602 = vmatprep.mubr.bf16.mxu0 0
    %603 = vmatmul.mubr.bf16.gmra.mrb[0].mxu0 %v175
    %v604 = vpop.f32.mrb[0].mxu0
    %v605 = vadd.f32 0.0, %v604
    %v606 = vpop.f32.mrb[0].mxu0
    %v607 = vpop.f32.mrb[0].mxu0
    %v608 = vadd.f32 0.0, %v607
    %v609 = vpop.f32.mrb[0].mxu0
    %610 = vmatprep.mubr.bf16.mxu0 0
    %611 = vmatmul.mubr.bf16.gmra.mrb[0].mxu0 %v176
    %v612 = vpop.f32.mrb[0].mxu0
    %v613 = vadd.f32 0.0, %v612
    %v614 = vpop.f32.mrb[0].mxu0
    %v615 = vpop.f32.mrb[0].mxu0
    %v616 = vadd.f32 0.0, %v615
    %v617 = vpop.f32.mrb[0].mxu0
    %618 = vmatprep.mubr.bf16.mxu0 0
    %619 = vmatmul.mubr.bf16.gmra.mrb[0].mxu0 %v177
    %v620 = vpop.f32.mrb[0].mxu0
    %v621 = vadd.f32 0.0, %v620
    %v622 = vpop.f32.mrb[0].mxu0
    %v623 = vpop.f32.mrb[0].mxu0
    %v624 = vadd.f32 0.0, %v623
    %v625 = vpop.f32.mrb[0].mxu0
    %626 = vmatprep.mubr.bf16.mxu0 0
    %627 = vmatmul.mubr.bf16.gmra.mrb[0].mxu0 %v178
    %v628 = vpop.f32.mrb[0].mxu0
    %v629 = vadd.f32 0.0, %v628
    %v630 = vpop.f32.mrb[0].mxu0
    %v631 = vpop.f32.mrb[0].mxu0
    %v632 = vadd.f32 0.0, %v631
    %v633 = vpop.f32.mrb[0].mxu0
    %634 = vmatprep.mubr.bf16.mxu0 0
    %635 = vmatmul.mubr.bf16.gmra.mrb[0].mxu0 %v179
    %v636 = vpop.f32.mrb[0].mxu0
    %v637 = vadd.f32 0.0, %v636
    %v638 = vpop.f32.mrb[0].mxu0
    %v639 = vpop.f32.mrb[0].mxu0
    %v640 = vadd.f32 0.0, %v639
    %v641 = vpop.f32.mrb[0].mxu0
    %642 = vmatprep.mubr.bf16.mxu0 0
    %643 = vmatmul.mubr.bf16.gmra.mrb[0].mxu0 %v180
    %v644 = vpop.f32.mrb[0].mxu0
    %v645 = vadd.f32 0.0, %v644
    %v646 = vpop.f32.mrb[0].mxu0
    %v647 = vpop.f32.mrb[0].mxu0
    %v648 = vadd.f32 0.0, %v647
    %v649 = vpop.f32.mrb[0].mxu0
    %650 = vmatprep.mubr.bf16.mxu0 0
    %651 = vmatmul.mubr.bf16.gmra.mrb[0].mxu0 %v181
    %v652 = vpop.f32.mrb[0].mxu0
    %v653 = vadd.f32 0.0, %v652
    %v654 = vpop.f32.mrb[0].mxu0
    %v655 = vpop.f32.mrb[0].mxu0
    %v656 = vadd.f32 0.0, %v655
    %v657 = vpop.f32.mrb[0].mxu0
    %658 = vmatprep.mubr.bf16.mxu0 0
    %659 = vmatmul.mubr.bf16.gmra.mrb[0].mxu0 %v182
    %v660 = vpop.f32.mrb[0].mxu0
    %v661 = vadd.f32 0.0, %v660
    %v662 = vpop.f32.mrb[0].mxu0
    %v663 = vpop.f32.mrb[0].mxu0
    %v664 = vadd.f32 0.0, %v663
    %v665 = vpop.f32.mrb[0].mxu0
    %666 = vmatprep.mubr.bf16.mxu0 0
    %667 = vmatmul.mubr.bf16.gmra.mrb[0].mxu0 %v183
    %v668 = vpop.f32.mrb[0].mxu0
    %v669 = vadd.f32 0.0, %v668
    %v670 = vpop.f32.mrb[0].mxu0
    %v671 = vpop.f32.mrb[0].mxu0
    %v672 = vadd.f32 0.0, %v671
    %v673 = vpop.f32.mrb[0].mxu0
    %674 = vmatprep.mubr.bf16.mxu0 0
    %675 = vmatmul.mubr.bf16.gmra.mrb[0].mxu0 %v184
    %v676 = vpop.f32.mrb[0].mxu0
    %v677 = vadd.f32 0.0, %v676
    %v678 = vpop.f32.mrb[0].mxu0
    %v679 = vpop.f32.mrb[0].mxu0
    %v680 = vadd.f32 0.0, %v679
    %v681 = vpop.f32.mrb[0].mxu0
    %682 = vdwg.mxu0
    %v683 = vpack.c.bf16 %v368, %v364
    %v684 = vpack.c.bf16 %v370, %v366
    %v685 = vpack.c.bf16 %v560, %v557
    %v686 = vpack.c.bf16 %v378, %v374
    %v687 = vpack.c.bf16 %v380, %v376
    %v688 = vpack.c.bf16 %v568, %v565
    %v689 = vpack.c.bf16 %v388, %v384
    %v690 = vpack.c.bf16 %v390, %v386
    %v691 = vpack.c.bf16 %v576, %v573
    %v692 = vpack.c.bf16 %v398, %v394
    %v693 = vpack.c.bf16 %v400, %v396
    %v694 = vpack.c.bf16 %v584, %v581
    %v695 = vpack.c.bf16 %v408, %v404
    %v696 = vpack.c.bf16 %v410, %v406
    %v697 = vpack.c.bf16 %v592, %v589
    %v698 = vpack.c.bf16 %v418, %v414
    %v699 = vpack.c.bf16 %v420, %v416
    %v700 = vpack.c.bf16 %v600, %v597
    %v701 = vpack.c.bf16 %v428, %v424
    %v702 = vpack.c.bf16 %v430, %v426
    %v703 = vpack.c.bf16 %v608, %v605
    %v704 = vpack.c.bf16 %v438, %v434
    %v705 = vpack.c.bf16 %v440, %v436
    %v706 = vpack.c.bf16 %v616, %v613
    %v707 = vpack.c.bf16 %v448, %v444
    %v708 = vpack.c.bf16 %v450, %v446
    %v709 = vpack.c.bf16 %v624, %v621
    %v710 = vpack.c.bf16 %v458, %v454
    %v711 = vpack.c.bf16 %v460, %v456
    %v712 = vpack.c.bf16 %v632, %v629
    %v713 = vpack.c.bf16 %v468, %v464
    %v714 = vpack.c.bf16 %v470, %v466
    %v715 = vpack.c.bf16 %v640, %v637
    %v716 = vpack.c.bf16 %v478, %v474
    %v717 = vpack.c.bf16 %v480, %v476
    %v718 = vpack.c.bf16 %v648, %v645
    %v719 = vpack.c.bf16 %v488, %v484
    %v720 = vpack.c.bf16 %v490, %v486
    %v721 = vpack.c.bf16 %v656, %v653
    %v722 = vpack.c.bf16 %v498, %v494
    %v723 = vpack.c.bf16 %v500, %v496
    %v724 = vpack.c.bf16 %v664, %v661
    %v725 = vpack.c.bf16 %v508, %v504
    %v726 = vpack.c.bf16 %v510, %v506
    %v727 = vpack.c.bf16 %v672, %v669
    %v728 = vpack.c.bf16 %v518, %v514
    %v729 = vpack.c.bf16 %v520, %v516
    %v730 = vpack.c.bf16 %v680, %v677
    %v779 = vunpack.c.l.b16 %v683
    %v780 = vunpack.c.l.b16 %v684
    %v781 = vunpack.c.l.b16 %v685
    %v782 = vunpack.c.h.b16 %v683
    %v783 = vunpack.c.h.b16 %v684
    %v784 = vunpack.c.h.b16 %v685
    %v785 = vunpack.c.l.b16 %v686
    %v786 = vunpack.c.l.b16 %v687
    %v787 = vunpack.c.l.b16 %v688
    %v788 = vunpack.c.h.b16 %v686
    %v789 = vunpack.c.h.b16 %v687
    %v790 = vunpack.c.h.b16 %v688
    %v791 = vunpack.c.l.b16 %v689
    %v792 = vunpack.c.l.b16 %v690
    %v793 = vunpack.c.l.b16 %v691
    %v794 = vunpack.c.h.b16 %v689
    %v795 = vunpack.c.h.b16 %v690
    %v796 = vunpack.c.h.b16 %v691
    %v797 = vunpack.c.l.b16 %v692
    %v798 = vunpack.c.l.b16 %v693
    %v799 = vunpack.c.l.b16 %v694
    %v800 = vunpack.c.h.b16 %v692
    %v801 = vunpack.c.h.b16 %v693
    %v802 = vunpack.c.h.b16 %v694
    %v803 = vunpack.c.l.b16 %v695
    %v804 = vunpack.c.l.b16 %v696
    %v805 = vunpack.c.l.b16 %v697
    %v806 = vunpack.c.h.b16 %v695
    %v807 = vunpack.c.h.b16 %v696
    %v808 = vunpack.c.h.b16 %v697
    %v809 = vunpack.c.l.b16 %v698
    %v810 = vunpack.c.l.b16 %v699
    %v811 = vunpack.c.l.b16 %v700
    %v812 = vunpack.c.h.b16 %v698
    %v813 = vunpack.c.h.b16 %v699
    %v814 = vunpack.c.h.b16 %v700
    %v815 = vunpack.c.l.b16 %v701
    %v816 = vunpack.c.l.b16 %v702
    %v817 = vunpack.c.l.b16 %v703
    %v818 = vunpack.c.h.b16 %v701
    %v819 = vunpack.c.h.b16 %v702
    %v820 = vunpack.c.h.b16 %v703
    %v821 = vunpack.c.l.b16 %v704
    %v822 = vunpack.c.l.b16 %v705
    %v823 = vunpack.c.l.b16 %v706
    %v824 = vunpack.c.h.b16 %v704
    %v825 = vunpack.c.h.b16 %v705
    %v826 = vunpack.c.h.b16 %v706
    %v827 = vunpack.c.l.b16 %v707
    %v828 = vunpack.c.l.b16 %v708
    %v829 = vunpack.c.l.b16 %v709
    %v830 = vunpack.c.h.b16 %v707
    %v831 = vunpack.c.h.b16 %v708
    %v832 = vunpack.c.h.b16 %v709
    %v833 = vunpack.c.l.b16 %v710
    %v834 = vunpack.c.l.b16 %v711
    %v835 = vunpack.c.l.b16 %v712
    %v836 = vunpack.c.h.b16 %v710
    %v837 = vunpack.c.h.b16 %v711
    %v838 = vunpack.c.h.b16 %v712
    %v839 = vunpack.c.l.b16 %v713
    %v840 = vunpack.c.l.b16 %v714
    %v841 = vunpack.c.l.b16 %v715
    %v842 = vunpack.c.h.b16 %v713
    %v843 = vunpack.c.h.b16 %v714
    %v844 = vunpack.c.h.b16 %v715
    %v845 = vunpack.c.l.b16 %v716
    %v846 = vunpack.c.l.b16 %v717
    %v847 = vunpack.c.l.b16 %v718
    %v848 = vunpack.c.h.b16 %v716
    %v849 = vunpack.c.h.b16 %v717
    %v850 = vunpack.c.h.b16 %v718
    %v851 = vunpack.c.l.b16 %v719
    %v852 = vunpack.c.l.b16 %v720
    %v853 = vunpack.c.l.b16 %v721
    %v854 = vunpack.c.h.b16 %v719
    %v855 = vunpack.c.h.b16 %v720
    %v856 = vunpack.c.h.b16 %v721
    %v857 = vunpack.c.l.b16 %v722
    %v858 = vunpack.c.l.b16 %v723
    %v859 = vunpack.c.l.b16 %v724
    %v860 = vunpack.c.h.b16 %v722
    %v861 = vunpack.c.h.b16 %v723
    %v862 = vunpack.c.h.b16 %v724
    %v863 = vunpack.c.l.b16 %v725
    %v864 = vunpack.c.l.b16 %v726
    %v865 = vunpack.c.l.b16 %v727
    %v866 = vunpack.c.h.b16 %v725
    %v867 = vunpack.c.h.b16 %v726
    %v868 = vunpack.c.h.b16 %v727
    %v869 = vunpack.c.l.b16 %v728
    %v870 = vunpack.c.l.b16 %v729
    %v871 = vunpack.c.l.b16 %v730
    %v872 = vunpack.c.h.b16 %v728
    %v873 = vunpack.c.h.b16 %v729
    %v874 = vunpack.c.h.b16 %v730
    %v875 = vpack.c.b16 %v780, %v779
    %v876 = vpack.c.b16 %v781, %v781
    %v877 = vpack.c.b16 %v783, %v782
    %v878 = vpack.c.b16 %v784, %v784
    %v879 = vpack.c.b16 %v786, %v785
    %v880 = vpack.c.b16 %v787, %v787
    %v881 = vpack.c.b16 %v789, %v788
    %v882 = vpack.c.b16 %v790, %v790
    %v883 = vpack.c.b16 %v792, %v791
    %v884 = vpack.c.b16 %v793, %v793
    %v885 = vpack.c.b16 %v795, %v794
    %v886 = vpack.c.b16 %v796, %v796
    %v887 = vpack.c.b16 %v798, %v797
    %v888 = vpack.c.b16 %v799, %v799
    %v889 = vpack.c.b16 %v801, %v800
    %v890 = vpack.c.b16 %v802, %v802
    %v891 = vpack.c.b16 %v804, %v803
    %v892 = vpack.c.b16 %v805, %v805
    %v893 = vpack.c.b16 %v807, %v806
    %v894 = vpack.c.b16 %v808, %v808
    %v895 = vpack.c.b16 %v810, %v809
    %v896 = vpack.c.b16 %v811, %v811
    %v897 = vpack.c.b16 %v813, %v812
    %v898 = vpack.c.b16 %v814, %v814
    %v899 = vpack.c.b16 %v816, %v815
    %v900 = vpack.c.b16 %v817, %v817
    %v901 = vpack.c.b16 %v819, %v818
    %v902 = vpack.c.b16 %v820, %v820
    %v903 = vpack.c.b16 %v822, %v821
    %v904 = vpack.c.b16 %v823, %v823
    %v905 = vpack.c.b16 %v825, %v824
    %v906 = vpack.c.b16 %v826, %v826
    %v907 = vpack.c.b16 %v828, %v827
    %v908 = vpack.c.b16 %v829, %v829
    %v909 = vpack.c.b16 %v831, %v830
    %v910 = vpack.c.b16 %v832, %v832
    %v911 = vpack.c.b16 %v834, %v833
    %v912 = vpack.c.b16 %v835, %v835
    %v913 = vpack.c.b16 %v837, %v836
    %v914 = vpack.c.b16 %v838, %v838
    %v915 = vpack.c.b16 %v840, %v839
    %v916 = vpack.c.b16 %v841, %v841
    %v917 = vpack.c.b16 %v843, %v842
    %v918 = vpack.c.b16 %v844, %v844
    %v919 = vpack.c.b16 %v846, %v845
    %v920 = vpack.c.b16 %v847, %v847
    %v921 = vpack.c.b16 %v849, %v848
    %v922 = vpack.c.b16 %v850, %v850
    %v923 = vpack.c.b16 %v852, %v851
    %v924 = vpack.c.b16 %v853, %v853
    %v925 = vpack.c.b16 %v855, %v854
    %v926 = vpack.c.b16 %v856, %v856
    %v927 = vpack.c.b16 %v858, %v857
    %v928 = vpack.c.b16 %v859, %v859
    %v929 = vpack.c.b16 %v861, %v860
    %v930 = vpack.c.b16 %v862, %v862
    %v931 = vpack.c.b16 %v864, %v863
    %v932 = vpack.c.b16 %v865, %v865
    %v933 = vpack.c.b16 %v867, %v866
    %v934 = vpack.c.b16 %v868, %v868
    %v935 = vpack.c.b16 %v870, %v869
    %v936 = vpack.c.b16 %v871, %v871
    %v937 = vpack.c.b16 %v873, %v872
    %v938 = vpack.c.b16 %v874, %v874
    %1003 = vst [vmem:[#allocation7] sm:$0xff] %v875
    %1004 = vst [vmem:[#allocation7 + $0x8] sm:$0xf] %v876
    %1005 = vst [vmem:[#allocation7 + $0xc] sm:$0xff] %v877
    %1006 = vst [vmem:[#allocation7 + $0x14] sm:$0xf] %v878
    %1007 = vst [vmem:[#allocation7 + $0x18] sm:$0xff] %v879
    %1008 = vst [vmem:[#allocation7 + $0x20] sm:$0xf] %v880
    %1009 = vst [vmem:[#allocation7 + $0x24] sm:$0xff] %v881
    %1010 = vst [vmem:[#allocation7 + $0x2c] sm:$0xf] %v882
    %1011 = vst [vmem:[#allocation7 + $0x30] sm:$0xff] %v883
    %1012 = vst [vmem:[#allocation7 + $0x38] sm:$0xf] %v884
    %1013 = vst [vmem:[#allocation7 + $0x3c] sm:$0xff] %v885
    %1014 = vst [vmem:[#allocation7 + $0x44] sm:$0xf] %v886
    %1015 = vst [vmem:[#allocation7 + $0x48] sm:$0xff] %v887
    %1016 = vst [vmem:[#allocation7 + $0x50] sm:$0xf] %v888
    %1017 = vst [vmem:[#allocation7 + $0x54] sm:$0xff] %v889
    %1018 = vst [vmem:[#allocation7 + $0x5c] sm:$0xf] %v890
    %1019 = vst [vmem:[#allocation7 + $0x60] sm:$0xff] %v891
    %1020 = vst [vmem:[#allocation7 + $0x68] sm:$0xf] %v892
    %1021 = vst [vmem:[#allocation7 + $0x6c] sm:$0xff] %v893
    %1022 = vst [vmem:[#allocation7 + $0x74] sm:$0xf] %v894
    %1023 = vst [vmem:[#allocation7 + $0x78] sm:$0xff] %v895
    %1024 = vst [vmem:[#allocation7 + $0x80] sm:$0xf] %v896
    %1025 = vst [vmem:[#allocation7 + $0x84] sm:$0xff] %v897
    %1026 = vst [vmem:[#allocation7 + $0x8c] sm:$0xf] %v898
    %1027 = vst [vmem:[#allocation7 + $0x90] sm:$0xff] %v899
    %1028 = vst [vmem:[#allocation7 + $0x98] sm:$0xf] %v900
    %1029 = vst [vmem:[#allocation7 + $0x9c] sm:$0xff] %v901
    %1030 = vst [vmem:[#allocation7 + $0xa4] sm:$0xf] %v902
    %1031 = vst [vmem:[#allocation7 + $0xa8] sm:$0xff] %v903
    %1032 = vst [vmem:[#allocation7 + $0xb0] sm:$0xf] %v904
    %1033 = vst [vmem:[#allocation7 + $0xb4] sm:$0xff] %v905
    %1034 = vst [vmem:[#allocation7 + $0xbc] sm:$0xf] %v906
    %1035 = vst [vmem:[#allocation7 + $0xc0] sm:$0xff] %v907
    %1036 = vst [vmem:[#allocation7 + $0xc8] sm:$0xf] %v908
    %1037 = vst [vmem:[#allocation7 + $0xcc] sm:$0xff] %v909
    %1038 = vst [vmem:[#allocation7 + $0xd4] sm:$0xf] %v910
    %1039 = vst [vmem:[#allocation7 + $0xd8] sm:$0xff] %v911
    %1040 = vst [vmem:[#allocation7 + $0xe0] sm:$0xf] %v912
    %1041 = vst [vmem:[#allocation7 + $0xe4] sm:$0xff] %v913
    %1042 = vst [vmem:[#allocation7 + $0xec] sm:$0xf] %v914
    %1043 = vst [vmem:[#allocation7 + $0xf0] sm:$0xff] %v915
    %1044 = vst [vmem:[#allocation7 + $0xf8] sm:$0xf] %v916
    %1045 = vst [vmem:[#allocation7 + $0xfc] sm:$0xff] %v917
    %1046 = vst [vmem:[#allocation7 + $0x104] sm:$0xf] %v918
    %1047 = vst [vmem:[#allocation7 + $0x108] sm:$0xff] %v919
    %1048 = vst [vmem:[#allocation7 + $0x110] sm:$0xf] %v920
    %1049 = vst [vmem:[#allocation7 + $0x114] sm:$0xff] %v921
    %1050 = vst [vmem:[#allocation7 + $0x11c] sm:$0xf] %v922
    %1051 = vst [vmem:[#allocation7 + $0x120] sm:$0xff] %v923
    %1052 = vst [vmem:[#allocation7 + $0x128] sm:$0xf] %v924
    %1053 = vst [vmem:[#allocation7 + $0x12c] sm:$0xff] %v925
    %1054 = vst [vmem:[#allocation7 + $0x134] sm:$0xf] %v926
    %1055 = vst [vmem:[#allocation7 + $0x138] sm:$0xff] %v927
    %1056 = vst [vmem:[#allocation7 + $0x140] sm:$0xf] %v928
    %1057 = vst [vmem:[#allocation7 + $0x144] sm:$0xff] %v929
    %1058 = vst [vmem:[#allocation7 + $0x14c] sm:$0xf] %v930
    %1059 = vst [vmem:[#allocation7 + $0x150] sm:$0xff] %v931
    %1060 = vst [vmem:[#allocation7 + $0x158] sm:$0xf] %v932
    %1061 = vst [vmem:[#allocation7 + $0x15c] sm:$0xff] %v933
    %1062 = vst [vmem:[#allocation7 + $0x164] sm:$0xf] %v934
    %1063 = vst [vmem:[#allocation7 + $0x168] sm:$0xff] %v935
    %1064 = vst [vmem:[#allocation7 + $0x170] sm:$0xf] %v936
    %1065 = vst [vmem:[#allocation7 + $0x174] sm:$0xff] %v937
    %1066 = vst [vmem:[#allocation7 + $0x17c] sm:$0xf] %v938
    // Predicated region
    $region18: #{tpu_custom_call.1} parent=1 // pred_check
      _
    $region19: #{tpu_custom_call.1} parent=1 // pred_check_branch
      %1068 = sbr.rel (0) target = $region21
    $region20: #{tpu_custom_call.1} parent=1 // pred_region
      %s1070 = ssub.s32 6144, 6144
      %1071 = vsyncadd [#allocation4], %s1070
      %s1072 = sshll.u32 [#allocation7], 4
      %s1073 = int_to_ptr.vmem [resolvable:$true] %s1072
      %1078 = dma.vmem_to_hbm [thread:$0]  %s1073, 6144, %s2, [#allocation4], 192, 192, 12
    $region21: #{tpu_custom_call.1} parent=1 // pred_fallthru
      _
    // Predicated region
    $region22: #{tpu_custom_call.1} parent=1 // pred_check
      _
    $region23: #{tpu_custom_call.1} parent=1 // pred_check_branch
      %1080 = sbr.rel (0) target = $region25
    $region24: #{tpu_custom_call.1} parent=1 // pred_region
      %1081 = dma.done [#allocation4], 6144
    $region25: #{tpu_custom_call.1} parent=1 // pred_fallthru
      _
    %1082 = vsyncpa [#allocation3], 1
    %1083 = vsyncpa [#allocation6], 1
    %1084 = vsyncpa [#allocation4], 1

</llo_original>
